<compile_context>
chip_gen: v6e
topology: v6e:2x2x1
jax: 0.10.0
libtpu: 0.0.40
codegen_flags: <defaults>
</compile_context>

<pallas_src>
import functools

import jax
import jax.numpy as jnp
from jax import lax
from jax.experimental import pallas as pl
from jax.experimental.pallas import tpu as pltpu


def _lmcl_kernel(s, m, label_ref, nfeat_ref, cent_ref,
                 logits_ref, margin_ref, ncent_t_ref):
    tb, tc = logits_ref.shape

    # Normalize + transpose + bf16-cast the centers tile once per class tile;
    # it stays VMEM-resident (input block and scratch) across the whole inner
    # batch axis, so this work (EUP rsqrt + XLU transpose) is amortized.
    @pl.when(pl.program_id(1) == 0)
    def _():
        cent = cent_ref[...]                                       # (TC, D) f32
        inv_c = lax.rsqrt(
            jnp.sum(cent * cent, axis=-1, keepdims=True) + 1e-12)
        # Store already transposed: the matmul below needs no per-step
        # transpose of the RHS.
        ncent_t_ref[...] = jnp.transpose(cent * inv_c).astype(jnp.bfloat16)

    # Cosine logits: (TB, D) bf16 x (D, TC) bf16 -> (TB, TC) f32 on the MXU.
    logits = lax.dot_general(
        nfeat_ref[...], ncent_t_ref[...],
        dimension_numbers=(((1,), (0,)), ((), ())),
        preferred_element_type=jnp.float32)

    # One-hot margin: (1, TC) class ids (offset by the class-tile origin)
    # broadcast-compared against the (TB, 1) label block. Pure VPU work.
    labels = label_ref[...]                                        # (TB, 1) i32
    class_ids = (lax.broadcasted_iota(jnp.int32, (1, tc), 1)
                 + pl.program_id(0) * tc)
    y_onehot = jnp.where(class_ids == labels,
                         jnp.float32(m), jnp.float32(0.0))         # (TB, TC)

    logits_ref[...] = logits.astype(logits_ref.dtype)
    margin_ref[...] = (jnp.float32(s) * (logits - y_onehot)).astype(
        margin_ref.dtype)


def _cdiv(a, b):
    return (a + b - 1) // b


def _round_up(x, n):
    return _cdiv(x, n) * n


def _vmem_bytes(tb, tc, d, out_bytes):
    """Rough VMEM working-set estimate (double-buffered blocks + scratch)."""
    feat = 2 * tb * d * 2                     # bf16 feature block
    lab = 2 * tb * 128 * 4                    # (TB, 1) i32, lane-padded
    cent = 2 * tc * d * 4                     # f32 centers block
    scratch = d * tc * 2                      # bf16 (D, TC) transposed scratch
    outs = 2 * 2 * tb * tc * out_bytes        # two outputs, double-buffered
    return feat + lab + cent + scratch + outs


def lmcl_forward(feat, label, centers, s=7.0, m=0.2,
                 block_b=512, block_c=2048, out_dtype=jnp.bfloat16):
    """CosFace forward. Returns (logits, margin_logits), both (B, num_classes)."""
    B, D = feat.shape
    C, Dc = centers.shape
    assert D == Dc

    out_bytes = jnp.dtype(out_dtype).itemsize
    D_pad = _round_up(D, 128)                 # lane-aligned contraction dim

    try:
        vmem_cap = pltpu.get_tpu_info().vmem_capacity_bytes
    except Exception:  # interpret mode / older runtime fallback
        vmem_cap = 64 * 1024 * 1024
    budget = int(vmem_cap * 0.85)

    # --- Tile selection ------------------------------------------------------
    B8 = _round_up(B, 8)
    C128 = _round_up(C, 128)
    tb_cap = max(8, _round_up(min(block_b, B8), 8))
    tc_cap = max(128, _round_up(min(block_c, C128), 128))
    while True:
        n_b = _cdiv(B8, tb_cap)
        TB = _round_up(_cdiv(B8, n_b), 8)
        n_c = _cdiv(C128, tc_cap)
        if n_c == 1 and C128 >= 256:
            # Keep >= 2 class tiles so the "parallel" class axis can split
            # across v7x's two TensorCores.
            n_c = 2
        TC = _round_up(_cdiv(C128, n_c), 128)
        if (_vmem_bytes(TB, TC, D_pad, out_bytes) <= budget
                or (TC == 128 and TB == 8)):
            break
        if TC > 128:
            tc_cap = max(128, _round_up(TC // 2, 128))
        else:
            tb_cap = max(8, _round_up(TB // 2, 8))
    B_pad = n_b * TB
    C_pad = n_c * TC

    # --- Feature pre-normalization: one tiny (B, D) XLA op, bf16 result ------
    feat32 = feat.astype(jnp.float32)
    inv_f = lax.rsqrt(jnp.sum(feat32 * feat32, axis=-1, keepdims=True) + 1e-12)
    nfeat = (feat32 * inv_f).astype(jnp.bfloat16)
    # Zero padding is norm-preserving (features already normalized).
    nfeat = jnp.pad(nfeat, ((0, B_pad - B), (0, D_pad - D)))

    cent = centers.astype(jnp.float32)
    if C_pad != C:
        # Pad class rows with ones so the in-kernel normalization stays benign;
        # padded columns are sliced off below.
        cent = jnp.concatenate(
            [cent, jnp.ones((C_pad - C, D), jnp.float32)], axis=0)
    if D_pad != D:
        cent = jnp.pad(cent, ((0, 0), (0, D_pad - D)))

    lab = label.astype(jnp.int32).reshape(-1)
    lab = jnp.pad(lab, (0, B_pad - B), constant_values=-1).reshape(B_pad, 1)

    kernel = functools.partial(_lmcl_kernel, float(s), float(m))
    grid = (C_pad // TC, B_pad // TB)   # class tiles outer, batch tiles inner

    est = _vmem_bytes(TB, TC, D_pad, out_bytes)
    vmem_limit = min(int(vmem_cap * 0.9),
                     max(32 * 1024 * 1024, est + (8 << 20)))

    logits_p, margin_p = pl.pallas_call(
        kernel,
        out_shape=(
            jax.ShapeDtypeStruct((B_pad, C_pad), out_dtype),
            jax.ShapeDtypeStruct((B_pad, C_pad), out_dtype),
        ),
        grid_spec=pltpu.PrefetchScalarGridSpec(
            num_scalar_prefetch=0,
            grid=grid,
            in_specs=[
                pl.BlockSpec((TB, 1), lambda ci, bi: (bi, 0)),       # labels
                pl.BlockSpec((TB, D_pad), lambda ci, bi: (bi, 0)),   # nfeat bf16
                pl.BlockSpec((TC, D_pad), lambda ci, bi: (ci, 0)),   # centers f32 (resident over bi)
            ],
            out_specs=(
                pl.BlockSpec((TB, TC), lambda ci, bi: (bi, ci)),
                pl.BlockSpec((TB, TC), lambda ci, bi: (bi, ci)),
            ),
            scratch_shapes=[pltpu.VMEM((D_pad, TC), jnp.bfloat16)],
        ),
        compiler_params=pltpu.CompilerParams(
            dimension_semantics=("parallel", "arbitrary"),
            vmem_limit_bytes=vmem_limit,
        ),
    )(lab, nfeat, cent)

    return logits_p[:B, :C], margin_p[:B, :C]


if __name__ == "__main__":
    # Small shapes consistent with the module: batch=8, feat_dim=32, classes=16.
    B, D, C = 8, 32, 16
    key = jax.random.PRNGKey(0)
    k_feat, k_cent, k_lab = jax.random.split(key, 3)

    feat = jax.random.normal(k_feat, (B, D), dtype=jnp.float32)
    # nn.Parameter(torch.randn(num_classes, feat_dim)) -> deterministic normal init.
    centers = jax.random.normal(k_cent, (C, D), dtype=jnp.float32)
    label = jax.random.randint(k_lab, (B,), 0, C, dtype=jnp.int32)

    logits, margin_logits = lmcl_forward(feat, label, centers, s=7.0, m=0.2)
    jax.block_until_ready((logits, margin_logits))

    # Reference in plain f32 JAX (PyTorch-equivalent). The kernel feeds the MXU
    # with bf16 normalized operands (f32 accumulate) and stores bf16 outputs,
    # so compare with bf16-level tolerances.
    nfeat_ref = feat / jnp.linalg.norm(feat, axis=-1, keepdims=True)
    ncent_ref = centers / jnp.linalg.norm(centers, axis=-1, keepdims=True)
    ref_logits = nfeat_ref @ ncent_ref.T
    y_onehot = jax.nn.one_hot(label, C, dtype=jnp.float32) * 0.2
    ref_margin = 7.0 * (ref_logits - y_onehot)

    assert logits.shape == (B, C) and margin_logits.shape == (B, C)
    assert jnp.allclose(logits.astype(jnp.float32), ref_logits,
                        atol=3e-2), "logits mismatch"
    assert jnp.allclose(margin_logits.astype(jnp.float32), ref_margin,
                        atol=2e-1), "margin mismatch"

    print("KERNEL_OK")
</pallas_src>

<mosaic_0001>
module attributes {stable_mosaic.version = 11 : i64} {
  func.func @_lmcl_kernel(%arg0: i32, %arg1: i32, %arg2: memref<8x1xi32, #tpu.memory_space<vmem>>, %arg3: memref<8x128xbf16, #tpu.memory_space<vmem>>, %arg4: memref<128x128xf32, #tpu.memory_space<vmem>>, %arg5: memref<8x128xbf16, #tpu.memory_space<vmem>>, %arg6: memref<8x128xbf16, #tpu.memory_space<vmem>>, %arg7: memref<128x128xbf16, #tpu.memory_space<vmem>>) attributes {dimension_semantics = [#tpu.dimension_semantics<parallel>, #tpu.dimension_semantics<arbitrary>], iteration_bounds = array<i64: 1, 1>, scalar_prefetch = 0 : i64, scratch_operands = 1 : i64, tpu.core_type = #tpu.core_type<tc>, window_params = [{transform_indices = @transform_0, window_bounds = array<i64: 8, 1>}, {transform_indices = @transform_1, window_bounds = array<i64: 8, 128>}, {transform_indices = @transform_2, window_bounds = array<i64: 128, 128>}, {transform_indices = @transform_3, window_bounds = array<i64: 8, 128>}, {transform_indices = @transform_4, window_bounds = array<i64: 8, 128>}]} {
    %c0_i32 = arith.constant 0 : i32
    %0 = arith.cmpi eq, %arg1, %c0_i32 : i32
    %1 = arith.extui %0 : i1 to i32
    %c0_i32_0 = arith.constant 0 : i32
    %2 = arith.cmpi ne, %1, %c0_i32_0 : i32
    scf.if %2 {
      %c0_13 = arith.constant 0 : index
      %c0_14 = arith.constant 0 : index
      %24 = vector.load %arg4[%c0_13, %c0_14] : memref<128x128xf32, #tpu.memory_space<vmem>>, vector<128x128xf32>
      %25 = arith.mulf %24, %24 : vector<128x128xf32>
      %cst_15 = arith.constant dense<0.000000e+00> : vector<128xf32>
      %26 = vector.multi_reduction <add>, %25, %cst_15 [1] : vector<128x128xf32> to vector<128xf32>
      %27 = vector.shape_cast %26 : vector<128xf32> to vector<128x1xf32>
      %cst_16 = arith.constant 9.99999996E-13 : f32
      %28 = vector.broadcast %cst_16 : f32 to vector<128x1xf32>
      %29 = arith.addf %27, %28 : vector<128x1xf32>
      %30 = math.rsqrt %29 : vector<128x1xf32>
      %31 = vector.broadcast %30 : vector<128x1xf32> to vector<128x128xf32>
      %32 = arith.mulf %24, %31 : vector<128x128xf32>
      %33 = tpu.transpose %32, [1, 0] : vector<128x128xf32> -> vector<128x128xf32>
      %34 = arith.truncf %33 : vector<128x128xf32> to vector<128x128xbf16>
      %c0_17 = arith.constant 0 : index
      %c0_18 = arith.constant 0 : index
      %35 = vector.load %arg7[%c0_17, %c0_18] : memref<128x128xbf16, #tpu.memory_space<vmem>>, vector<128x128xbf16>
      tpu.vector_store %arg7[%c0_17, %c0_18], %34 {strides = array<i32>} : memref<128x128xbf16, #tpu.memory_space<vmem>>, vector<128x128xbf16>,
    } else {
    }
    %c0 = arith.constant 0 : index
    %c0_1 = arith.constant 0 : index
    %3 = vector.load %arg3[%c0, %c0_1] : memref<8x128xbf16, #tpu.memory_space<vmem>>, vector<8x128xbf16>
    %c0_2 = arith.constant 0 : index
    %c0_3 = arith.constant 0 : index
    %4 = vector.load %arg7[%c0_2, %c0_3] : memref<128x128xbf16, #tpu.memory_space<vmem>>, vector<128x128xbf16>
    %cst = arith.constant dense<0.000000e+00> : vector<8x128xf32>
    %5 = tpu.matmul %3, %4, %cst {dimension_numbers = #tpu.dot_dimension_numbers<[1], [0], [0], [1], [0, 0, 1, 1], [], []>} : vector<8x128xbf16>, vector<128x128xbf16>, vector<8x128xf32> -> vector<8x128xf32>
    %c0_4 = arith.constant 0 : index
    %c0_5 = arith.constant 0 : index
    %6 = vector.load %arg2[%c0_4, %c0_5] : memref<8x1xi32, #tpu.memory_space<vmem>>, vector<8x1xi32>
    %7 = tpu.iota {dimensions = array<i32: 1>} : vector<1x128xi32>
    %c128_i32 = arith.constant 128 : i32
    %8 = arith.muli %arg0, %c128_i32 : i32
    %9 = vector.broadcast %8 : i32 to vector<1x128xi32>
    %10 = arith.addi %7, %9 : vector<1x128xi32>
    %11 = vector.broadcast %10 : vector<1x128xi32> to vector<8x128xi32>
    %12 = vector.broadcast %6 : vector<8x1xi32> to vector<8x128xi32>
    %13 = arith.cmpi eq, %11, %12 : vector<8x128xi32>
    %cst_6 = arith.constant 2.000000e-01 : f32
    %cst_7 = arith.constant 0.000000e+00 : f32
    %14 = vector.broadcast %cst_6 : f32 to vector<8x128xf32>
    %15 = vector.broadcast %cst_7 : f32 to vector<8x128xf32>
    %16 = arith.select %13, %14, %15 : vector<8x128xi1>, vector<8x128xf32>
    %17 = arith.truncf %5 : vector<8x128xf32> to vector<8x128xbf16>
    %c0_8 = arith.constant 0 : index
    %c0_9 = arith.constant 0 : index
    %18 = vector.load %arg5[%c0_8, %c0_9] : memref<8x128xbf16, #tpu.memory_space<vmem>>, vector<8x128xbf16>
    tpu.vector_store %arg5[%c0_8, %c0_9], %17 {strides = array<i32>} : memref<8x128xbf16, #tpu.memory_space<vmem>>, vector<8x128xbf16>,
    %19 = arith.subf %5, %16 : vector<8x128xf32>
    %cst_10 = arith.constant 7.000000e+00 : f32
    %20 = vector.broadcast %cst_10 : f32 to vector<8x128xf32>
    %21 = arith.mulf %20, %19 : vector<8x128xf32>
    %22 = arith.truncf %21 : vector<8x128xf32> to vector<8x128xbf16>
    %c0_11 = arith.constant 0 : index
    %c0_12 = arith.constant 0 : index
    %23 = vector.load %arg6[%c0_11, %c0_12] : memref<8x128xbf16, #tpu.memory_space<vmem>>, vector<8x128xbf16>
    tpu.vector_store %arg6[%c0_11, %c0_12], %22 {strides = array<i32>} : memref<8x128xbf16, #tpu.memory_space<vmem>>, vector<8x128xbf16>,
    return
  }
  func.func @transform_0(%arg0: i32, %arg1: i32) -> (i32, i32) {
    %c0_i32 = arith.constant 0 : i32
    %c0_i32_0 = arith.constant 0 : i32
    return %arg1, %c0_i32 : i32, i32
  }
  func.func @transform_1(%arg0: i32, %arg1: i32) -> (i32, i32) {
    %c0_i32 = arith.constant 0 : i32
    %c0_i32_0 = arith.constant 0 : i32
    return %arg1, %c0_i32 : i32, i32
  }
  func.func @transform_2(%arg0: i32, %arg1: i32) -> (i32, i32) {
    %c0_i32 = arith.constant 0 : i32
    %c0_i32_0 = arith.constant 0 : i32
    return %arg0, %c0_i32 : i32, i32
  }
  func.func @transform_3(%arg0: i32, %arg1: i32) -> (i32, i32) {
    %c0_i32 = arith.constant 0 : i32
    return %arg1, %arg0 : i32, i32
  }
  func.func @transform_4(%arg0: i32, %arg1: i32) -> (i32, i32) {
    %c0_i32 = arith.constant 0 : i32
    return %arg1, %arg0 : i32, i32
  }
}

</mosaic_0001>

<llo_original>
// kernel: tpu_custom_call.1
$region0: #{tpu_custom_call.1}
  #allocation0 [shape = 'u32[]', space=smem, size = 0x4, offset = 0x4, fixed_abs, tag = 'smem constant byte address 0x4 - core index']
  #allocation1 [shape = 'u32[144,128]{1,0:T(1,128)}', space=vmem, size = 0x12000, scoped, tag = 'internal scratch']
  #allocation2 [shape = 'bf16[128,128]{1,0:T(8,128)(2,1)}', space=vmem, size = 0x8000, scoped, tag = 'scratch operand']
  %s0 = inlined_call_operand.vmem [shape: s32[8,1], index: 0, kind: input, shape index: {}]
  %s1 = inlined_call_operand.vmem [shape: bf16[8,128], index: 1, kind: input, shape index: {}]
  %s2 = inlined_call_operand.hbm [shape: f32[128,128], index: 2, kind: input, shape index: {}]
  %s3 = inlined_call_operand.hbm [shape: bf16[8,128], index: 3, kind: output, shape index: {0}]
  %s4 = inlined_call_operand.hbm [shape: bf16[8,128], index: 4, kind: output, shape index: {1}]
  %5 = xla_tuple %s3, %s4
  %s6 = sld [smem:[#allocation0]]
  $region38: #{tpu_custom_call.1} parent=0
    _
  %s8 = ssub.s32 1, %s6
  %s9 = scalar_select 0, %s8, %s6
  $region1: #{tpu_custom_call.1} parent=0
    #allocation3 [shape = 'u8[65536]{0}', space=vmem, size = 0x10000, scoped, tag = 'input window, operand 2, single buffered']
    #allocation4 [shape = 's32[1]{0}', space=sflag, size = 0x4, scoped, tag = 'scoped memory for tpu_custom_call.1']
    #allocation5 [shape = 's32[1]{0}', space=sflag, size = 0x4, scoped, tag = 'scoped memory for tpu_custom_call.1']
    #allocation6 [shape = 'u8[2048]{0}', space=vmem, size = 0x800, scoped, tag = 'output window, operand 0, single buffered']
    #allocation7 [shape = 'u8[2048]{0}', space=vmem, size = 0x800, scoped, tag = 'output window, operand 1, single buffered']
    #allocation8 [shape = 's32[1]{0}', space=sflag, size = 0x4, scoped, tag = 'scoped memory for tpu_custom_call.1']
    %10 = vsyncpa [#allocation4], 0
    %11 = vsyncpa [#allocation5], 0
    %12 = vsyncpa [#allocation8], 0
    // Predicated region
    $region2: #{tpu_custom_call.1} parent=1 // pred_check
      _
    $region3: #{tpu_custom_call.1} parent=1 // pred_check_branch
      %14 = sbr.rel (0) target = $region5
    $region4: #{tpu_custom_call.1} parent=1 // pred_region
      _
    $region5: #{tpu_custom_call.1} parent=1 // pred_fallthru
      _
    // Predicated region
    $region6: #{tpu_custom_call.1} parent=1 // pred_check
      _
    $region7: #{tpu_custom_call.1} parent=1 // pred_check_branch
      %16 = sbr.rel (0) target = $region9
    $region8: #{tpu_custom_call.1} parent=1 // pred_region
      _
    $region9: #{tpu_custom_call.1} parent=1 // pred_fallthru
      _
    // Predicated region
    $region10: #{tpu_custom_call.1} parent=1 // pred_check
      _
    $region11: #{tpu_custom_call.1} parent=1 // pred_check_branch
      %18 = sbr.rel (0) target = $region13
    $region12: #{tpu_custom_call.1} parent=1 // pred_region
      %s20 = ssub.s32 2048, 2048
      %21 = vsyncadd [#allocation4], %s20
      %s22 = sshll.u32 [#allocation3], 4
      %s23 = int_to_ptr.vmem [resolvable:$true] %s22
      %28 = dma.hbm_to_vmem [thread:$0]  %s2, 2048, %s23, [#allocation4], 128, 128, 8
    $region13: #{tpu_custom_call.1} parent=1 // pred_fallthru
      _
    // Predicated region
    $region14: #{tpu_custom_call.1} parent=1 // pred_check
      _
    $region15: #{tpu_custom_call.1} parent=1 // pred_check_branch
      %30 = sbr.rel (0) target = $region17
    $region16: #{tpu_custom_call.1} parent=1 // pred_region
      %31 = dma.done [#allocation4], 2048
    $region17: #{tpu_custom_call.1} parent=1 // pred_fallthru
      _
    %p33 = scmp.eq.s32.totalorder 0, 0
    // Predicated region
    $region18: #{tpu_custom_call.1} parent=1 // pred_check
      %p34 = pneg %p33
    $region19: #{tpu_custom_call.1} parent=1 // pred_check_branch
      %36 = sbr.rel (%p34) target = $region21
    $region20: #{tpu_custom_call.1} parent=1 // pred_region
      %v37 = vld [vmem:[#allocation3] sm:$0xff]
      %v38 = vld [vmem:[#allocation3 + $0x8] sm:$0xff]
      %v39 = vld [vmem:[#allocation3 + $0x10] sm:$0xff]
      %v40 = vld [vmem:[#allocation3 + $0x18] sm:$0xff]
      %v41 = vld [vmem:[#allocation3 + $0x20] sm:$0xff]
      %v42 = vld [vmem:[#allocation3 + $0x28] sm:$0xff]
      %v43 = vld [vmem:[#allocation3 + $0x30] sm:$0xff]
      %v44 = vld [vmem:[#allocation3 + $0x38] sm:$0xff]
      %v45 = vld [vmem:[#allocation3 + $0x40] sm:$0xff]
      %v46 = vld [vmem:[#allocation3 + $0x48] sm:$0xff]
      %v47 = vld [vmem:[#allocation3 + $0x50] sm:$0xff]
      %v48 = vld [vmem:[#allocation3 + $0x58] sm:$0xff]
      %v49 = vld [vmem:[#allocation3 + $0x60] sm:$0xff]
      %v50 = vld [vmem:[#allocation3 + $0x68] sm:$0xff]
      %v51 = vld [vmem:[#allocation3 + $0x70] sm:$0xff]
      %v52 = vld [vmem:[#allocation3 + $0x78] sm:$0xff]
      %v53 = vmul.f32 %v37, %v37
      %v54 = vmul.f32 %v38, %v38
      %v55 = vmul.f32 %v39, %v39
      %v56 = vmul.f32 %v40, %v40
      %v57 = vmul.f32 %v41, %v41
      %v58 = vmul.f32 %v42, %v42
      %v59 = vmul.f32 %v43, %v43
      %v60 = vmul.f32 %v44, %v44
      %v61 = vmul.f32 %v45, %v45
      %v62 = vmul.f32 %v46, %v46
      %v63 = vmul.f32 %v47, %v47
      %v64 = vmul.f32 %v48, %v48
      %v65 = vmul.f32 %v49, %v49
      %v66 = vmul.f32 %v50, %v50
      %v67 = vmul.f32 %v51, %v51
      %v68 = vmul.f32 %v52, %v52
      %69 = vadd.xlane.f32.xlu0 %v53
      %v70 = vpop.xlane.xlu0 %69
      %71 = vadd.xlane.f32.xlu0 %v54
      %v72 = vpop.xlane.xlu0 %71
      %73 = vadd.xlane.f32.xlu0 %v55
      %v74 = vpop.xlane.xlu0 %73
      %75 = vadd.xlane.f32.xlu0 %v56
      %v76 = vpop.xlane.xlu0 %75
      %77 = vadd.xlane.f32.xlu0 %v57
      %v78 = vpop.xlane.xlu0 %77
      %79 = vadd.xlane.f32.xlu0 %v58
      %v80 = vpop.xlane.xlu0 %79
      %81 = vadd.xlane.f32.xlu0 %v59
      %v82 = vpop.xlane.xlu0 %81
      %83 = vadd.xlane.f32.xlu0 %v60
      %v84 = vpop.xlane.xlu0 %83
      %85 = vadd.xlane.f32.xlu0 %v61
      %v86 = vpop.xlane.xlu0 %85
      %87 = vadd.xlane.f32.xlu0 %v62
      %v88 = vpop.xlane.xlu0 %87
      %89 = vadd.xlane.f32.xlu0 %v63
      %v90 = vpop.xlane.xlu0 %89
      %91 = vadd.xlane.f32.xlu0 %v64
      %v92 = vpop.xlane.xlu0 %91
      %93 = vadd.xlane.f32.xlu0 %v65
      %v94 = vpop.xlane.xlu0 %93
      %95 = vadd.xlane.f32.xlu0 %v66
      %v96 = vpop.xlane.xlu0 %95
      %97 = vadd.xlane.f32.xlu0 %v67
      %v98 = vpop.xlane.xlu0 %97
      %99 = vadd.xlane.f32.xlu0 %v68
      %v100 = vpop.xlane.xlu0 %99
      %v101 = vadd.f32 %v70, 1e-12
      %v102 = vadd.f32 %v72, 1e-12
      %v103 = vadd.f32 %v74, 1e-12
      %v104 = vadd.f32 %v76, 1e-12
      %v105 = vadd.f32 %v78, 1e-12
      %v106 = vadd.f32 %v80, 1e-12
      %v107 = vadd.f32 %v82, 1e-12
      %v108 = vadd.f32 %v84, 1e-12
      %v109 = vadd.f32 %v86, 1e-12
      %v110 = vadd.f32 %v88, 1e-12
      %v111 = vadd.f32 %v90, 1e-12
      %v112 = vadd.f32 %v92, 1e-12
      %v113 = vadd.f32 %v94, 1e-12
      %v114 = vadd.f32 %v96, 1e-12
      %v115 = vadd.f32 %v98, 1e-12
      %v116 = vadd.f32 %v100, 1e-12
      %v117 = vrsqrt.pop %v101
      %v118 = vrsqrt.pop %v102
      %v119 = vrsqrt.pop %v103
      %v120 = vrsqrt.pop %v104
      %v121 = vrsqrt.pop %v105
      %v122 = vrsqrt.pop %v106
      %v123 = vrsqrt.pop %v107
      %v124 = vrsqrt.pop %v108
      %v125 = vrsqrt.pop %v109
      %v126 = vrsqrt.pop %v110
      %v127 = vrsqrt.pop %v111
      %v128 = vrsqrt.pop %v112
      %v129 = vrsqrt.pop %v113
      %v130 = vrsqrt.pop %v114
      %v131 = vrsqrt.pop %v115
      %v132 = vrsqrt.pop %v116
      %v133 = vmul.f32 %v37, %v117
      %v134 = vmul.f32 %v38, %v118
      %v135 = vmul.f32 %v39, %v119
      %v136 = vmul.f32 %v40, %v120
      %v137 = vmul.f32 %v41, %v121
      %v138 = vmul.f32 %v42, %v122
      %v139 = vmul.f32 %v43, %v123
      %v140 = vmul.f32 %v44, %v124
      %v141 = vmul.f32 %v45, %v125
      %v142 = vmul.f32 %v46, %v126
      %v143 = vmul.f32 %v47, %v127
      %v144 = vmul.f32 %v48, %v128
      %v145 = vmul.f32 %v49, %v129
      %v146 = vmul.f32 %v50, %v130
      %v147 = vmul.f32 %v51, %v131
      %v148 = vmul.f32 %v52, %v132
      %149 = vxpose.xlu0.b32.start [1/16] %v133, 128
      %150 = vxpose.xlu0.b32.cont [2/16] %v134, 128
      %151 = vxpose.xlu0.b32.cont [3/16] %v135, 128
      %152 = vxpose.xlu0.b32.cont [4/16] %v136, 128
      %153 = vxpose.xlu0.b32.cont [5/16] %v137, 128
      %154 = vxpose.xlu0.b32.cont [6/16] %v138, 128
      %155 = vxpose.xlu0.b32.cont [7/16] %v139, 128
      %156 = vxpose.xlu0.b32.cont [8/16] %v140, 128
      %157 = vxpose.xlu0.b32.cont [9/16] %v141, 128
      %158 = vxpose.xlu0.b32.cont [10/16] %v142, 128
      %159 = vxpose.xlu0.b32.cont [11/16] %v143, 128
      %160 = vxpose.xlu0.b32.cont [12/16] %v144, 128
      %161 = vxpose.xlu0.b32.cont [13/16] %v145, 128
      %162 = vxpose.xlu0.b32.cont [14/16] %v146, 128
      %163 = vxpose.xlu0.b32.cont [15/16] %v147, 128
      %164 = vxpose.xlu0.b32.end [16/16] %v148, 128
      %v165 = vpop.trf.xlu0
      %v166 = vpop.trf.xlu0
      %v167 = vpop.trf.xlu0
      %v168 = vpop.trf.xlu0
      %v169 = vpop.trf.xlu0
      %v170 = vpop.trf.xlu0
      %v171 = vpop.trf.xlu0
      %v172 = vpop.trf.xlu0
      %v173 = vpop.trf.xlu0
      %v174 = vpop.trf.xlu0
      %v175 = vpop.trf.xlu0
      %v176 = vpop.trf.xlu0
      %v177 = vpop.trf.xlu0
      %v178 = vpop.trf.xlu0
      %v179 = vpop.trf.xlu0
      %v180 = vpop.trf.xlu0
      %v181 = vpack.c.bf16 %v166, %v165
      %v182 = vpack.c.bf16 %v168, %v167
      %v183 = vpack.c.bf16 %v170, %v169
      %v184 = vpack.c.bf16 %v172, %v171
      %v185 = vpack.c.bf16 %v174, %v173
      %v186 = vpack.c.bf16 %v176, %v175
      %v187 = vpack.c.bf16 %v178, %v177
      %v188 = vpack.c.bf16 %v180, %v179
      %v197 = vunpack.c.l.b16 %v181
      %v198 = vunpack.c.h.b16 %v181
      %v199 = vunpack.c.l.b16 %v182
      %v200 = vunpack.c.h.b16 %v182
      %v201 = vunpack.c.l.b16 %v183
      %v202 = vunpack.c.h.b16 %v183
      %v203 = vunpack.c.l.b16 %v184
      %v204 = vunpack.c.h.b16 %v184
      %v205 = vunpack.c.l.b16 %v185
      %v206 = vunpack.c.h.b16 %v185
      %v207 = vunpack.c.l.b16 %v186
      %v208 = vunpack.c.h.b16 %v186
      %v209 = vunpack.c.l.b16 %v187
      %v210 = vunpack.c.h.b16 %v187
      %v211 = vunpack.c.l.b16 %v188
      %v212 = vunpack.c.h.b16 %v188
      %v213 = vpack.c.b16 %v197, %v197
      %v214 = vpack.c.b16 %v198, %v198
      %v215 = vpack.c.b16 %v199, %v199
      %v216 = vpack.c.b16 %v200, %v200
      %v217 = vpack.c.b16 %v201, %v201
      %v218 = vpack.c.b16 %v202, %v202
      %v219 = vpack.c.b16 %v203, %v203
      %v220 = vpack.c.b16 %v204, %v204
      %v221 = vpack.c.b16 %v205, %v205
      %v222 = vpack.c.b16 %v206, %v206
      %v223 = vpack.c.b16 %v207, %v207
      %v224 = vpack.c.b16 %v208, %v208
      %v225 = vpack.c.b16 %v209, %v209
      %v226 = vpack.c.b16 %v210, %v210
      %v227 = vpack.c.b16 %v211, %v211
      %v228 = vpack.c.b16 %v212, %v212
      %245 = vst [vmem:[#allocation2] sm:$0xf] %v213
      %246 = vst [vmem:[#allocation2 + $0x4] sm:$0xf] %v214
      %247 = vst [vmem:[#allocation2 + $0x8] sm:$0xf] %v215
      %248 = vst [vmem:[#allocation2 + $0xc] sm:$0xf] %v216
      %249 = vst [vmem:[#allocation2 + $0x10] sm:$0xf] %v217
      %250 = vst [vmem:[#allocation2 + $0x14] sm:$0xf] %v218
      %251 = vst [vmem:[#allocation2 + $0x18] sm:$0xf] %v219
      %252 = vst [vmem:[#allocation2 + $0x1c] sm:$0xf] %v220
      %253 = vst [vmem:[#allocation2 + $0x20] sm:$0xf] %v221
      %254 = vst [vmem:[#allocation2 + $0x24] sm:$0xf] %v222
      %255 = vst [vmem:[#allocation2 + $0x28] sm:$0xf] %v223
      %256 = vst [vmem:[#allocation2 + $0x2c] sm:$0xf] %v224
      %257 = vst [vmem:[#allocation2 + $0x30] sm:$0xf] %v225
      %258 = vst [vmem:[#allocation2 + $0x34] sm:$0xf] %v226
      %259 = vst [vmem:[#allocation2 + $0x38] sm:$0xf] %v227
      %260 = vst [vmem:[#allocation2 + $0x3c] sm:$0xf] %v228
    $region21: #{tpu_custom_call.1} parent=1 // pred_fallthru
      _
    %v261 = vld [vmem:[%s1] sm:$0xf]
    %v262 = vld [vmem:[#allocation2] sm:$0xf]
    %v263 = vld [vmem:[#allocation2 + $0x4] sm:$0xf]
    %v264 = vld [vmem:[#allocation2 + $0x8] sm:$0xf]
    %v265 = vld [vmem:[#allocation2 + $0xc] sm:$0xf]
    %v266 = vld [vmem:[#allocation2 + $0x10] sm:$0xf]
    %v267 = vld [vmem:[#allocation2 + $0x14] sm:$0xf]
    %v268 = vld [vmem:[#allocation2 + $0x18] sm:$0xf]
    %v269 = vld [vmem:[#allocation2 + $0x1c] sm:$0xf]
    %v270 = vld [vmem:[#allocation2 + $0x20] sm:$0xf]
    %v271 = vld [vmem:[#allocation2 + $0x24] sm:$0xf]
    %v272 = vld [vmem:[#allocation2 + $0x28] sm:$0xf]
    %v273 = vld [vmem:[#allocation2 + $0x2c] sm:$0xf]
    %v274 = vld [vmem:[#allocation2 + $0x30] sm:$0xf]
    %v275 = vld [vmem:[#allocation2 + $0x34] sm:$0xf]
    %v276 = vld [vmem:[#allocation2 + $0x38] sm:$0xf]
    %v277 = vld [vmem:[#allocation2 + $0x3c] sm:$0xf]
    %v294 = vunpack.c.l.b16 %v262
    %v295 = vunpack.c.l.b16 %v263
    %v296 = vunpack.c.l.b16 %v264
    %v297 = vunpack.c.l.b16 %v265
    %v298 = vunpack.c.l.b16 %v266
    %v299 = vunpack.c.l.b16 %v267
    %v300 = vunpack.c.l.b16 %v268
    %v301 = vunpack.c.l.b16 %v269
    %v302 = vunpack.c.l.b16 %v270
    %v303 = vunpack.c.l.b16 %v271
    %v304 = vunpack.c.l.b16 %v272
    %v305 = vunpack.c.l.b16 %v273
    %v306 = vunpack.c.l.b16 %v274
    %v307 = vunpack.c.l.b16 %v275
    %v308 = vunpack.c.l.b16 %v276
    %v309 = vunpack.c.l.b16 %v277
    %v310 = vpack.c.b16 %v295, %v294
    %v311 = vpack.c.b16 %v297, %v296
    %v312 = vpack.c.b16 %v299, %v298
    %v313 = vpack.c.b16 %v301, %v300
    %v314 = vpack.c.b16 %v303, %v302
    %v315 = vpack.c.b16 %v305, %v304
    %v316 = vpack.c.b16 %v307, %v306
    %v317 = vpack.c.b16 %v309, %v308
    %326 = vmatprep.subr.bf16.mxu0 0
    %327 = vmatpush1.bf16.msra.mxu0 %v317
    %328 = vmatprep.subr.bf16.mxu0 0
    %329 = vmatpush1.bf16.msra.mxu0 %v316
    %330 = vmatprep.subr.bf16.mxu0 0
    %331 = vmatpush1.bf16.msra.mxu0 %v315
    %332 = vmatprep.subr.bf16.mxu0 0
    %333 = vmatpush1.bf16.msra.mxu0 %v314
    %334 = vmatprep.subr.bf16.mxu0 0
    %335 = vmatpush1.bf16.msra.mxu0 %v313
    %336 = vmatprep.subr.bf16.mxu0 0
    %337 = vmatpush1.bf16.msra.mxu0 %v312
    %338 = vmatprep.subr.bf16.mxu0 0
    %339 = vmatpush1.bf16.msra.mxu0 %v311
    %340 = vmatprep.subr.bf16.mxu0 0
    %341 = vmatpush1.bf16.msra.mxu0 %v310
    %342 = vmatprep.subr.bf16.mxu0 0
    %343 = vmatpush2.bf16.msra.mxu0 0
    %344 = vmatprep.subr.bf16.mxu0 0
    %345 = vmatpush2.bf16.msra.mxu0 0
    %346 = vmatprep.subr.bf16.mxu0 0
    %347 = vmatpush2.bf16.msra.mxu0 0
    %348 = vmatprep.subr.bf16.mxu0 0
    %349 = vmatpush2.bf16.msra.mxu0 0
    %350 = vmatprep.subr.bf16.mxu0 0
    %351 = vmatpush2.bf16.msra.mxu0 0
    %352 = vmatprep.subr.bf16.mxu0 0
    %353 = vmatpush2.bf16.msra.mxu0 0
    %354 = vmatprep.subr.bf16.mxu0 0
    %355 = vmatpush2.bf16.msra.mxu0 0
    %356 = vmatprep.subr.bf16.mxu0 0
    %357 = vmatpush2.bf16.msra.mxu0 0
    %358 = vmatprep.mubr.bf16.mxu0 0
    %359 = vmatmul.mubr.bf16.gmra.mxu0 %v261
    %v360 = vpop.f32.mrf.mxu0
    %v361 = vadd.f32 0.0, %v360
    %v362 = vpop.f32.mrf.mxu0
    %v363 = vpop.f32.mrf.mxu0
    %v364 = vpop.f32.mrf.mxu0
    %365 = vdwg.mxu0
    %v366 = vld [vmem:[%s0] sm:$0xff]
    %v367 = vlaneseq
    %v368 = vand.u32 %v367, 127
    %s369 = smul.u32 0, 128
    %v370 = vstv %s369
    %v371 = vadd.s32 %v368, %v370
    %372 = vset.pattern.permute.xlu0 0
    %373 = vperm.xlu0 %372, %v366
    %v374 = vpop.permute.xlu0 %373
    %vm375 = vcmp.eq.s32.totalorder %v371, %v374
    %v376 = vsel %vm375, 0.2, 0.0
    %v377 = vpack.c.bf16 %v361, %v361
    %378 = vst [vmem:[#allocation6] sm:$0xf] %v377
    %v379 = vsub.f32 %v361, %v376
    %v380 = vmul.f32 %v379, 7.0
    %v381 = vpack.c.bf16 %v380, %v380
    %382 = vst [vmem:[#allocation7] sm:$0xf] %v381
    // Predicated region
    $region22: #{tpu_custom_call.1} parent=1 // pred_check
      _
    $region23: #{tpu_custom_call.1} parent=1 // pred_check_branch
      %384 = sbr.rel (0) target = $region25
    $region24: #{tpu_custom_call.1} parent=1 // pred_region
      %s386 = ssub.s32 64, 64
      %387 = vsyncadd [#allocation5], %s386
      %s389 = sshll.u32 [#allocation6], 4
      %s390 = int_to_ptr.vmem [resolvable:$true] %s389
      %392 = dma.vmem_to_hbm [thread:$0]  %s390, 64, %s3, [#allocation5]
    $region25: #{tpu_custom_call.1} parent=1 // pred_fallthru
      _
    // Predicated region
    $region26: #{tpu_custom_call.1} parent=1 // pred_check
      _
    $region27: #{tpu_custom_call.1} parent=1 // pred_check_branch
      %394 = sbr.rel (0) target = $region29
    $region28: #{tpu_custom_call.1} parent=1 // pred_region
      %s396 = ssub.s32 64, 64
      %397 = vsyncadd [#allocation8], %s396
      %s399 = sshll.u32 [#allocation7], 4
      %s400 = int_to_ptr.vmem [resolvable:$true] %s399
      %402 = dma.vmem_to_hbm [thread:$0]  %s400, 64, %s4, [#allocation8]
    $region29: #{tpu_custom_call.1} parent=1 // pred_fallthru
      _
    // Predicated region
    $region30: #{tpu_custom_call.1} parent=1 // pred_check
      _
    $region31: #{tpu_custom_call.1} parent=1 // pred_check_branch
      %404 = sbr.rel (0) target = $region33
    $region32: #{tpu_custom_call.1} parent=1 // pred_region
      %405 = dma.done [#allocation5], 64
    $region33: #{tpu_custom_call.1} parent=1 // pred_fallthru
      _
    // Predicated region
    $region34: #{tpu_custom_call.1} parent=1 // pred_check
      _
    $region35: #{tpu_custom_call.1} parent=1 // pred_check_branch
      %407 = sbr.rel (0) target = $region37
    $region36: #{tpu_custom_call.1} parent=1 // pred_region
      %408 = dma.done [#allocation8], 64
    $region37: #{tpu_custom_call.1} parent=1 // pred_fallthru
      _
    %409 = vsyncpa [#allocation4], 1
    %410 = vsyncpa [#allocation5], 1
    %411 = vsyncpa [#allocation8], 1

</llo_original>
